<compile_context>
chip_gen: v6e
topology: v6e:2x2x1
jax: 0.10.0
libtpu: 0.0.40
codegen_flags: <defaults>
</compile_context>

<pallas_src>
import functools

import jax
import jax.numpy as jnp
from jax import lax
from jax.experimental import pallas as pl
from jax.experimental.pallas import tpu as pltpu


# ----------------------------- Pallas kernel ---------------------------------

def _conv_gn_gelu_kernel(p_ref, w_ref, g_ref, b_ref, o_ref, mean_ref, m2_ref, *,
                         eps, inv_lout, tl):
    # p_ref    : (1, CK, TL)      im2col patch tile, time on the lane axis
    # w_ref    : (C_out, CK)      conv weight (channel-major over (C_in, K))
    # g_ref    : (C_out, 1)       GroupNorm gamma
    # b_ref    : (C_out, 1)       GroupNorm beta
    # o_ref    : (1, C_out, TL)   output tile (PyTorch NCL layout)
    # mean_ref : (C_out, 1) f32   running per-channel mean  (VMEM scratch)
    # m2_ref   : (C_out, 1) f32   running per-channel M2    (VMEM scratch)
    # eps / inv_lout / tl are static Python scalars (inlined literals).
    ph = pl.program_id(1)   # 0 = accumulate stats, 1 = normalize + GELU + store
    t = pl.program_id(2)    # L_out tile index

    # Conv1d tile as an MXU matmul, f32 accumulation: (C_out, CK) @ (CK, TL).
    # Needed by both phases (phase-1 recompute is ~free since CK is tiny).
    y = jnp.dot(w_ref[...], p_ref[0], preferred_element_type=jnp.float32)

    @pl.when(jnp.logical_and(ph == 0, t == 0))
    def _init():
        mean_ref[...] = jnp.zeros_like(mean_ref)
        m2_ref[...] = jnp.zeros_like(m2_ref)

    @pl.when(ph == 0)
    def _accumulate():
        # Per-tile two-pass stats + Chan/Welford merge across tiles
        # (cancellation-safe, unlike a global E[y^2] - mean^2).
        tile_mean = jnp.sum(y, axis=-1, keepdims=True) * (1.0 / tl)
        d = y - tile_mean
        tile_m2 = jnp.sum(d * d, axis=-1, keepdims=True)
        n_a = (t * tl).astype(jnp.float32)        # samples merged so far
        n_ab = n_a + float(tl)
        delta = tile_mean - mean_ref[...]
        mean_ref[...] = mean_ref[...] + delta * (float(tl) / n_ab)
        m2_ref[...] = m2_ref[...] + tile_m2 + (delta * delta) * (n_a * float(tl) / n_ab)

    @pl.when(ph == 1)
    def _normalize():
        var = m2_ref[...] * inv_lout              # biased variance (PyTorch GroupNorm)
        y_hat = (y - mean_ref[...]) * lax.rsqrt(var + eps)
        y_hat = y_hat * g_ref[...] + b_ref[...]
        # Exact (erf-based) GELU, matching nn.GELU() / ACT2FN["gelu"].
        # (tanh approximation would move this to the EUP slot; kept erf for exactness.)
        inv_sqrt2 = 0.7071067811865476
        out = 0.5 * y_hat * (1.0 + lax.erf(y_hat * inv_sqrt2))
        o_ref[0] = out.astype(o_ref.dtype)


# ------------------------------ Python wrapper --------------------------------

def _choose_time_tile(l_out, tl_max):
    """Largest lane-dense tile (multiple of 128) that divides L_out, else full L_out."""
    if l_out <= tl_max:
        return l_out
    for tl in range((tl_max // 128) * 128, 0, -128):
        if l_out % tl == 0:
            return tl
    # TODO(synk): ragged last tile would need in-kernel masking; fall back to one tile.
    return l_out


def hubert_group_norm_conv_layer(x, conv_w, conv_b, gn_w, gn_b, *, stride, eps=1e-5,
                                 stream_dtype=None, out_dtype=None, tl_max=1024):
    """x: (B, C_in, L).  Returns (B, C_out, L_out) in PyTorch NCL layout.

    stream_dtype : optional dtype (e.g. jnp.bfloat16) for the patch/weight streams
                   (MXU still accumulates in f32).  Default: keep x.dtype (exact).
    out_dtype    : output dtype (default x.dtype).
    tl_max       : max L_out tile (lanes).  1024 fits comfortably in every
                   generation's scoped VMEM (v7x: 64 MiB physical); raise on v5e/v6e
                   if profiling shows exposed DMA.
    """
    B, C_in, L = x.shape
    C_out, C_in_w, K = conv_w.shape
    assert C_in_w == C_in
    L_out = (L - K) // stride + 1
    CK = C_in * K
    TL = _choose_time_tile(L_out, tl_max)
    num_t = L_out // TL

    # Gather-free im2col via identity-filter conv. Feature dim is channel-major
    # (index = ci*K + k), matching conv_w.reshape(C_out, C_in*K) below.
    patches = lax.conv_general_dilated_patches(
        x, filter_shape=(K,), window_strides=(stride,), padding="VALID",
        dimension_numbers=("NCH", "OIH", "NCH"))            # (B, CK, L_out)

    w2 = conv_w.reshape(C_out, CK)                          # (C_out, CK)
    if stream_dtype is not None:
        patches = patches.astype(stream_dtype)
        w2 = w2.astype(stream_dtype)
    g2 = gn_w.reshape(C_out, 1).astype(jnp.float32)
    b2 = gn_b.reshape(C_out, 1).astype(jnp.float32)
    # conv_b is intentionally unused: with num_groups == num_channels the per-channel
    # mean subtraction in GroupNorm cancels a constant per-channel bias exactly.
    assert gn_w.shape[0] == C_out and gn_b.shape[0] == C_out
    del conv_b

    if out_dtype is None:
        out_dtype = x.dtype

    kernel = functools.partial(_conv_gn_gelu_kernel, eps=float(eps),
                               inv_lout=1.0 / float(L_out), tl=int(TL))

    out = pl.pallas_call(
        kernel,
        out_shape=jax.ShapeDtypeStruct((B, C_out, L_out), out_dtype),
        grid=(B, 2, num_t),                     # (batch, phase, L_out tile)
        in_specs=[
            pl.BlockSpec((1, CK, TL), lambda b, ph, t: (b, 0, t)),
            pl.BlockSpec((C_out, CK), lambda b, ph, t: (0, 0)),
            pl.BlockSpec((C_out, 1), lambda b, ph, t: (0, 0)),
            pl.BlockSpec((C_out, 1), lambda b, ph, t: (0, 0)),
        ],
        # During phase 0 the output block index is pinned to tile 0 (kernel does not
        # write it), so each output tile is DMA'd to HBM exactly once, right after its
        # phase-1 write.
        out_specs=pl.BlockSpec((1, C_out, TL), lambda b, ph, t: (b, 0, t * ph)),
        scratch_shapes=[pltpu.VMEM((C_out, 1), jnp.float32),   # running mean
                        pltpu.VMEM((C_out, 1), jnp.float32)],  # running M2
        compiler_params=pltpu.CompilerParams(
            # batch is independent -> megacore-shardable on v7x; phase/tile are ordered.
            dimension_semantics=("parallel", "arbitrary", "arbitrary"),
            # Safe on every generation (v7x scoped default is 32 of 64 MiB physical);
            # per-tile footprint here is only a few MiB even at C_out=512, TL=1024.
            vmem_limit_bytes=32 * 1024 * 1024,
        ),
    )(patches, w2, g2, b2)

    return out  # already (B, C_out, L_out) — no wrapper transpose


# --------------------------- pure-JAX reference -------------------------------

def _reference(x, conv_w, conv_b, gn_w, gn_b, *, stride, eps=1e-5):
    y = lax.conv_general_dilated(
        x, conv_w, window_strides=(stride,), padding="VALID",
        dimension_numbers=("NCH", "OIH", "NCH"))
    y = y + conv_b[None, :, None]
    mean = jnp.mean(y, axis=2, keepdims=True)
    var = jnp.mean((y - mean) ** 2, axis=2, keepdims=True)
    y = (y - mean) * lax.rsqrt(var + eps)
    y = y * gn_w[None, :, None] + gn_b[None, :, None]
    return 0.5 * y * (1.0 + lax.erf(y / jnp.sqrt(2.0)))


# ----------------------------------- main --------------------------------------

if __name__ == "__main__":
    # Synthetic config for layer_id=0, leads_as_channels=False:
    #   in_conv_dim = 1, out_conv_dim = conv_dim[0], kernel = conv_kernel[0],
    #   stride = conv_stride[0], feat_extract_activation = "gelu".
    B = 2
    C_IN = 1
    C_OUT = 32          # conv_dim[0]
    K = 10              # conv_kernel[0]
    STRIDE = 5          # conv_stride[0]
    L_OUT = 256
    L = (L_OUT - 1) * STRIDE + K        # 1285 -> L_out = 256 (two 128-lane tiles)

    key = jax.random.PRNGKey(0)
    kx, kw, kb, kg, kbeta = jax.random.split(key, 5)

    x = jax.random.normal(kx, (B, C_IN, L), dtype=jnp.float32)
    conv_w = jax.random.normal(kw, (C_OUT, C_IN, K), dtype=jnp.float32) * 0.1
    conv_b = jax.random.normal(kb, (C_OUT,), dtype=jnp.float32) * 0.1
    gn_w = 1.0 + 0.1 * jax.random.normal(kg, (C_OUT,), dtype=jnp.float32)
    gn_b = 0.1 * jax.random.normal(kbeta, (C_OUT,), dtype=jnp.float32)

    ref = _reference(x, conv_w, conv_b, gn_w, gn_b, stride=STRIDE)

    # f32 streams (default): exact match vs reference, multi-tile Welford path.
    out = hubert_group_norm_conv_layer(x, conv_w, conv_b, gn_w, gn_b,
                                       stride=STRIDE, tl_max=128)
    out = jax.block_until_ready(out)
    assert out.shape == ref.shape == (B, C_OUT, L_OUT)
    assert jnp.allclose(out, ref, atol=2e-5, rtol=2e-5), "f32 mismatch vs reference"

    # bf16 patch/weight streams (review: fewer MXU passes + half the patch HBM bytes);
    # accumulation stays f32, so only input-rounding error remains.
    out_bf16 = hubert_group_norm_conv_layer(x, conv_w, conv_b, gn_w, gn_b,
                                            stride=STRIDE, tl_max=128,
                                            stream_dtype=jnp.bfloat16)
    out_bf16 = jax.block_until_ready(out_bf16)
    assert jnp.allclose(out_bf16, ref, atol=3e-2, rtol=3e-2), "bf16 mismatch vs reference"

    print("KERNEL_OK")
</pallas_src>

<mosaic_0001>
module attributes {stable_mosaic.version = 11 : i64} {
  func.func @_conv_gn_gelu_kernel(%arg0: i32, %arg1: i32, %arg2: i32, %arg3: memref<1x10x128xf32, #tpu.memory_space<vmem>>, %arg4: memref<32x10xf32, #tpu.memory_space<vmem>>, %arg5: memref<32x1xf32, #tpu.memory_space<vmem>>, %arg6: memref<32x1xf32, #tpu.memory_space<vmem>>, %arg7: memref<1x32x128xf32, #tpu.memory_space<vmem>>, %arg8: memref<32x1xf32, #tpu.memory_space<vmem>>, %arg9: memref<32x1xf32, #tpu.memory_space<vmem>>) attributes {dimension_semantics = [#tpu.dimension_semantics<parallel>, #tpu.dimension_semantics<arbitrary>, #tpu.dimension_semantics<arbitrary>], iteration_bounds = array<i64: 2, 2, 2>, scalar_prefetch = 0 : i64, scratch_operands = 2 : i64, tpu.core_type = #tpu.core_type<tc>, window_params = [{transform_indices = @transform_0, window_bounds = array<i64: 1, 10, 128>}, {pipeline_mode = #tpu.pipeline_mode<synchronous>, transform_indices = @transform_1, window_bounds = array<i64: 32, 10>}, {pipeline_mode = #tpu.pipeline_mode<synchronous>, transform_indices = @transform_2, window_bounds = array<i64: 32, 1>}, {pipeline_mode = #tpu.pipeline_mode<synchronous>, transform_indices = @transform_3, window_bounds = array<i64: 32, 1>}, {transform_indices = @transform_4, window_bounds = array<i64: 1, 32, 128>}]} {
    %c0 = arith.constant 0 : index
    %c0_0 = arith.constant 0 : index
    %0 = vector.load %arg4[%c0, %c0_0] : memref<32x10xf32, #tpu.memory_space<vmem>>, vector<32x10xf32>
    %c0_1 = arith.constant 0 : index
    %c0_2 = arith.constant 0 : index
    %c0_3 = arith.constant 0 : index
    %1 = vector.load %arg3[%c0_1, %c0_2, %c0_3] : memref<1x10x128xf32, #tpu.memory_space<vmem>>, vector<1x10x128xf32>
    %2 = vector.shape_cast %1 : vector<1x10x128xf32> to vector<10x128xf32>
    %cst = arith.constant dense<0.000000e+00> : vector<32x128xf32>
    %3 = tpu.matmul %0, %2, %cst {dimension_numbers = #tpu.dot_dimension_numbers<[1], [0], [0], [1], [0, 0, 1, 1], [], []>} : vector<32x10xf32>, vector<10x128xf32>, vector<32x128xf32> -> vector<32x128xf32>
    %c0_i32 = arith.constant 0 : i32
    %4 = arith.cmpi eq, %arg1, %c0_i32 : i32
    %c0_i32_4 = arith.constant 0 : i32
    %5 = arith.cmpi eq, %arg2, %c0_i32_4 : i32
    %6 = arith.andi %4, %5 : i1
    %7 = arith.extui %6 : i1 to i32
    %c0_i32_5 = arith.constant 0 : i32
    %8 = arith.cmpi ne, %7, %c0_i32_5 : i32
    scf.if %8 {
      %cst_9 = arith.constant 0.000000e+00 : f32
      %15 = vector.broadcast %cst_9 : f32 to vector<32x1xf32>
      %c0_10 = arith.constant 0 : index
      %c0_11 = arith.constant 0 : index
      %16 = vector.load %arg8[%c0_10, %c0_11] : memref<32x1xf32, #tpu.memory_space<vmem>>, vector<32x1xf32>
      tpu.vector_store %arg8[%c0_10, %c0_11], %15 {strides = array<i32>} : memref<32x1xf32, #tpu.memory_space<vmem>>, vector<32x1xf32>,
      %cst_12 = arith.constant 0.000000e+00 : f32
      %17 = vector.broadcast %cst_12 : f32 to vector<32x1xf32>
      %c0_13 = arith.constant 0 : index
      %c0_14 = arith.constant 0 : index
      %18 = vector.load %arg9[%c0_13, %c0_14] : memref<32x1xf32, #tpu.memory_space<vmem>>, vector<32x1xf32>
      tpu.vector_store %arg9[%c0_13, %c0_14], %17 {strides = array<i32>} : memref<32x1xf32, #tpu.memory_space<vmem>>, vector<32x1xf32>,
    } else {
    }
    %c0_i32_6 = arith.constant 0 : i32
    %9 = arith.cmpi eq, %arg1, %c0_i32_6 : i32
    %10 = arith.extui %9 : i1 to i32
    %c0_i32_7 = arith.constant 0 : i32
    %11 = arith.cmpi ne, %10, %c0_i32_7 : i32
    scf.if %11 {
      %cst_9 = arith.constant dense<0.000000e+00> : vector<32xf32>
      %15 = vector.multi_reduction <add>, %3, %cst_9 [1] : vector<32x128xf32> to vector<32xf32>
      %16 = vector.shape_cast %15 : vector<32xf32> to vector<32x1xf32>
      %cst_10 = arith.constant 7.812500e-03 : f32
      %17 = vector.broadcast %cst_10 : f32 to vector<32x1xf32>
      %18 = arith.mulf %16, %17 : vector<32x1xf32>
      %19 = vector.broadcast %18 : vector<32x1xf32> to vector<32x128xf32>
      %20 = arith.subf %3, %19 : vector<32x128xf32>
      %21 = arith.mulf %20, %20 : vector<32x128xf32>
      %cst_11 = arith.constant dense<0.000000e+00> : vector<32xf32>
      %22 = vector.multi_reduction <add>, %21, %cst_11 [1] : vector<32x128xf32> to vector<32xf32>
      %23 = vector.shape_cast %22 : vector<32xf32> to vector<32x1xf32>
      %c128_i32 = arith.constant 128 : i32
      %24 = arith.muli %arg2, %c128_i32 : i32
      %25 = arith.sitofp %24 : i32 to f32
      %cst_12 = arith.constant 1.280000e+02 : f32
      %26 = arith.addf %25, %cst_12 : f32
      %c0_13 = arith.constant 0 : index
      %c0_14 = arith.constant 0 : index
      %27 = vector.load %arg8[%c0_13, %c0_14] : memref<32x1xf32, #tpu.memory_space<vmem>>, vector<32x1xf32>
      %28 = arith.subf %18, %27 : vector<32x1xf32>
      %c0_15 = arith.constant 0 : index
      %c0_16 = arith.constant 0 : index
      %29 = vector.load %arg8[%c0_15, %c0_16] : memref<32x1xf32, #tpu.memory_space<vmem>>, vector<32x1xf32>
      %cst_17 = arith.constant 1.280000e+02 : f32
      %30 = arith.divf %cst_17, %26 : f32
      %31 = vector.broadcast %30 : f32 to vector<32x1xf32>
      %32 = arith.mulf %28, %31 : vector<32x1xf32>
      %33 = arith.addf %29, %32 : vector<32x1xf32>
      %c0_18 = arith.constant 0 : index
      %c0_19 = arith.constant 0 : index
      %34 = vector.load %arg8[%c0_18, %c0_19] : memref<32x1xf32, #tpu.memory_space<vmem>>, vector<32x1xf32>
      tpu.vector_store %arg8[%c0_18, %c0_19], %33 {strides = array<i32>} : memref<32x1xf32, #tpu.memory_space<vmem>>, vector<32x1xf32>,
      %c0_20 = arith.constant 0 : index
      %c0_21 = arith.constant 0 : index
      %35 = vector.load %arg9[%c0_20, %c0_21] : memref<32x1xf32, #tpu.memory_space<vmem>>, vector<32x1xf32>
      %36 = arith.addf %35, %23 : vector<32x1xf32>
      %37 = arith.mulf %28, %28 : vector<32x1xf32>
      %cst_22 = arith.constant 1.280000e+02 : f32
      %38 = arith.mulf %25, %cst_22 : f32
      %39 = arith.divf %38, %26 : f32
      %40 = vector.broadcast %39 : f32 to vector<32x1xf32>
      %41 = arith.mulf %37, %40 : vector<32x1xf32>
      %42 = arith.addf %36, %41 : vector<32x1xf32>
      %c0_23 = arith.constant 0 : index
      %c0_24 = arith.constant 0 : index
      %43 = vector.load %arg9[%c0_23, %c0_24] : memref<32x1xf32, #tpu.memory_space<vmem>>, vector<32x1xf32>
      tpu.vector_store %arg9[%c0_23, %c0_24], %42 {strides = array<i32>} : memref<32x1xf32, #tpu.memory_space<vmem>>, vector<32x1xf32>,
    } else {
    }
    %c1_i32 = arith.constant 1 : i32
    %12 = arith.cmpi eq, %arg1, %c1_i32 : i32
    %13 = arith.extui %12 : i1 to i32
    %c0_i32_8 = arith.constant 0 : i32
    %14 = arith.cmpi ne, %13, %c0_i32_8 : i32
    scf.if %14 {
      %c0_9 = arith.constant 0 : index
      %c0_10 = arith.constant 0 : index
      %15 = vector.load %arg9[%c0_9, %c0_10] : memref<32x1xf32, #tpu.memory_space<vmem>>, vector<32x1xf32>
      %cst_11 = arith.constant 3.906250e-03 : f32
      %16 = vector.broadcast %cst_11 : f32 to vector<32x1xf32>
      %17 = arith.mulf %15, %16 : vector<32x1xf32>
      %c0_12 = arith.constant 0 : index
      %c0_13 = arith.constant 0 : index
      %18 = vector.load %arg8[%c0_12, %c0_13] : memref<32x1xf32, #tpu.memory_space<vmem>>, vector<32x1xf32>
      %19 = vector.broadcast %18 : vector<32x1xf32> to vector<32x128xf32>
      %20 = arith.subf %3, %19 : vector<32x128xf32>
      %cst_14 = arith.constant 9.99999974E-6 : f32
      %21 = vector.broadcast %cst_14 : f32 to vector<32x1xf32>
      %22 = arith.addf %17, %21 : vector<32x1xf32>
      %23 = math.rsqrt %22 : vector<32x1xf32>
      %24 = vector.broadcast %23 : vector<32x1xf32> to vector<32x128xf32>
      %25 = arith.mulf %20, %24 : vector<32x128xf32>
      %c0_15 = arith.constant 0 : index
      %c0_16 = arith.constant 0 : index
      %26 = vector.load %arg5[%c0_15, %c0_16] : memref<32x1xf32, #tpu.memory_space<vmem>>, vector<32x1xf32>
      %27 = vector.broadcast %26 : vector<32x1xf32> to vector<32x128xf32>
      %28 = arith.mulf %25, %27 : vector<32x128xf32>
      %c0_17 = arith.constant 0 : index
      %c0_18 = arith.constant 0 : index
      %29 = vector.load %arg6[%c0_17, %c0_18] : memref<32x1xf32, #tpu.memory_space<vmem>>, vector<32x1xf32>
      %30 = vector.broadcast %29 : vector<32x1xf32> to vector<32x128xf32>
      %31 = arith.addf %28, %30 : vector<32x128xf32>
      %cst_19 = arith.constant 5.000000e-01 : f32
      %32 = vector.broadcast %cst_19 : f32 to vector<32x128xf32>
      %33 = arith.mulf %32, %31 : vector<32x128xf32>
      %cst_20 = arith.constant 0.707106769 : f32
      %34 = vector.broadcast %cst_20 : f32 to vector<32x128xf32>
      %35 = arith.mulf %31, %34 : vector<32x128xf32>
      %36 = math.erf %35 : vector<32x128xf32>
      %cst_21 = arith.constant 1.000000e+00 : f32
      %37 = vector.broadcast %cst_21 : f32 to vector<32x128xf32>
      %38 = arith.addf %37, %36 : vector<32x128xf32>
      %39 = arith.mulf %33, %38 : vector<32x128xf32>
      %c0_22 = arith.constant 0 : index
      %c0_23 = arith.constant 0 : index
      %c0_24 = arith.constant 0 : index
      %40 = vector.load %arg7[%c0_22, %c0_23, %c0_24] : memref<1x32x128xf32, #tpu.memory_space<vmem>>, vector<1x32x128xf32>
      %41 = vector.shape_cast %40 : vector<1x32x128xf32> to vector<32x128xf32>
      %42 = vector.shape_cast %39 : vector<32x128xf32> to vector<1x32x128xf32>
      tpu.vector_store %arg7[%c0_22, %c0_23, %c0_24], %42 {strides = array<i32>} : memref<1x32x128xf32, #tpu.memory_space<vmem>>, vector<1x32x128xf32>,
    } else {
    }
    return
  }
  func.func @transform_0(%arg0: i32, %arg1: i32, %arg2: i32) -> (i32, i32, i32) {
    %c0_i32 = arith.constant 0 : i32
    %c0_i32_0 = arith.constant 0 : i32
    return %arg0, %c0_i32, %arg2 : i32, i32, i32
  }
  func.func @transform_1(%arg0: i32, %arg1: i32, %arg2: i32) -> (i32, i32) {
    %c0_i32 = arith.constant 0 : i32
    %c0_i32_0 = arith.constant 0 : i32
    %c0_i32_1 = arith.constant 0 : i32
    return %c0_i32, %c0_i32_0 : i32, i32
  }
  func.func @transform_2(%arg0: i32, %arg1: i32, %arg2: i32) -> (i32, i32) {
    %c0_i32 = arith.constant 0 : i32
    %c0_i32_0 = arith.constant 0 : i32
    %c0_i32_1 = arith.constant 0 : i32
    return %c0_i32, %c0_i32_0 : i32, i32
  }
  func.func @transform_3(%arg0: i32, %arg1: i32, %arg2: i32) -> (i32, i32) {
    %c0_i32 = arith.constant 0 : i32
    %c0_i32_0 = arith.constant 0 : i32
    %c0_i32_1 = arith.constant 0 : i32
    return %c0_i32, %c0_i32_0 : i32, i32
  }
  func.func @transform_4(%arg0: i32, %arg1: i32, %arg2: i32) -> (i32, i32, i32) {
    %0 = arith.muli %arg2, %arg1 : i32
    %c0_i32 = arith.constant 0 : i32
    %c0_i32_0 = arith.constant 0 : i32
    return %arg0, %c0_i32, %0 : i32, i32, i32
  }
}

</mosaic_0001>

<llo_original>
// kernel: tpu_custom_call.1
$region0: #{tpu_custom_call.1}
  #allocation0 [shape = 'u32[]', space=smem, size = 0x4, offset = 0x4, fixed_abs, tag = 'smem constant byte address 0x4 - core index']
  #allocation1 [shape = 'u32[144,128]{1,0:T(1,128)}', space=vmem, size = 0x12000, scoped, tag = 'internal scratch']
  #allocation2 [shape = 'f32[32,1]{1,0:T(8,128)}', space=vmem, size = 0x4000, scoped, tag = 'scratch operand']
  #allocation3 [shape = 'f32[32,1]{1,0:T(8,128)}', space=vmem, size = 0x4000, scoped, tag = 'scratch operand']
  %s0 = inlined_call_operand.vmem [shape: f32[2,10,256], index: 0, kind: input, shape index: {}]
  %s1 = inlined_call_operand.vmem [shape: f32[32,10], index: 1, kind: input, shape index: {}]
  %s2 = inlined_call_operand.vmem [shape: f32[32,1], index: 2, kind: input, shape index: {}]
  %s3 = inlined_call_operand.vmem [shape: f32[32,1], index: 3, kind: input, shape index: {}]
  %s4 = inlined_call_operand.hbm [shape: f32[2,32,256], index: 4, kind: output, shape index: {}]
  %s5 = sld [smem:[#allocation0]]
  $region99: #{tpu_custom_call.1} parent=0
    _
  %s7 = ssub.s32 1, %s5
  %s8 = scalar_select 0, %s7, %s5
  $region1: #{tpu_custom_call.1} parent=0
    #allocation4 [shape = 'u8[16384]{0}', space=vmem, size = 0x4000, scoped, tag = 'input window, operand 0']
    #allocation5 [shape = 'u8[32768]{0}', space=vmem, size = 0x8000, scoped, tag = 'output window, operand 0']
    #allocation6 [shape = 's32[2]{0}', space=sflag, size = 0x8, scoped, tag = 'scoped memory for tpu_custom_call.1']
    %9 = vsyncpa [#allocation6], 0
    %s10 = scalar_lea.sflag [#allocation6], 1
    %11 = vsyncpa %s10, 0
    loop: start=0, step=1, limit=10
    $region2: #{tpu_custom_call.1} parent=1 // loop_pre_header
      _
    $region3: #{tpu_custom_call.1} parent=1 // loop_header
      %s13 = sphi 0, %s17
      %p14 = scmp.ge.s32.totalorder %s13, 10
      %s20 = sphi 0, %s39
      %s21 = sphi 0, %s35
      %s22 = sphi 0, %s31
      %s23 = sphi 0, %s20
      %s24 = sphi 0, %s21
      %s25 = sphi 0, %s22
      %s26 = sphi 0, %s23
      %s27 = sphi 0, %s24
      %s28 = sphi 0, %s25
      %s44 = sphi 0, %s46
      %s47 = sphi 0, %s44
      %s48 = sphi 0, %s47
      %s64 = sphi 0, %s48
      %s68 = sphi 0, %s68
      %s70 = sphi 0, %s68
      %s71 = sphi 0, %s70
      %s85 = sphi 0, %s71
      %s89 = sphi 0, %s89
      %s91 = sphi 0, %s89
      %s92 = sphi 0, %s91
      %s106 = sphi 0, %s92
      %s110 = sphi 0, %s110
      %s112 = sphi 0, %s110
      %s113 = sphi 0, %s112
      %s127 = sphi 0, %s113
      %s137 = sphi 0, %s139
      %s140 = sphi 0, %s137
      %s141 = sphi 0, %s140
      %s157 = sphi 0, %s141
    $region4: #{tpu_custom_call.1} parent=1 // loop_header_branch
      %16 = sbr.rel (%p14) target = $region8
    $region5: #{tpu_custom_call.1} parent=1 // loop_body
      %s18 = ssub.s32 %s13, 1
      %s19 = ssub.s32 %s13, 2
      %s29 = sadd.s32 1, %s22
      %p30 = scmp.ge.s32.totalorder %s29, 2
      %s31 = scalar_select %p30, 0, %s29
      %s32 = sadd.s32 1, %s21
      %s33 = scalar_select %p30, %s32, %s21
      %p34 = scmp.ge.s32.totalorder %s33, 2
      %s35 = scalar_select %p34, 0, %s33
      %s36 = sadd.s32 1, %s20
      %s37 = scalar_select %p34, %s36, %s20
      %p38 = scmp.ge.s32.totalorder %s37, 2
      %s39 = scalar_select %p38, 0, %s37
      %s40 = ssub.s32 %s20, %s39
      %s41 = ssub.s32 %s22, %s31
      %s42 = sor.u32 %s40, %s41
      %p43 = scmp.eq.s32.totalorder %s42, 0
      %s45 = sadd.s32 %s44, 1
      %s46 = scalar_select %p43, %s44, %s45
      %p49 = pneg %p43
      %p50 = scmp.eq.s32.totalorder %s13, 7
      %p51 = por %p49, %p50
      %p52 = scmp.ne.s32.totalorder %s44, %s47
      %p53 = scmp.eq.s32.totalorder %s13, 0
      %p54 = por %p52, %p53
      %p55 = scmp.ne.s32.totalorder %s44, %s47
      %p56 = scmp.eq.s32.totalorder %s18, 7
      %p57 = por %p55, %p56
      %p58 = scmp.ne.s32.totalorder %s47, %s48
      %p59 = scmp.eq.s32.totalorder %s18, 0
      %p60 = por %p58, %p59
      %p61 = scmp.ne.s32.totalorder %s47, %s48
      %p62 = scmp.eq.s32.totalorder %s19, 7
      %p63 = por %p61, %p62
      %p65 = scmp.ne.s32.totalorder %s48, %s64
      %p66 = scmp.eq.s32.totalorder %s19, 0
      %p67 = por %p65, %p66
      %s69 = sadd.s32 %s68, 1
      %p72 = scmp.eq.s32.totalorder %s13, 7
      %p73 = scmp.ne.s32.totalorder %s68, %s70
      %p74 = scmp.eq.s32.totalorder %s13, 0
      %p75 = por %p73, %p74
      %p76 = scmp.ne.s32.totalorder %s68, %s70
      %p77 = scmp.eq.s32.totalorder %s18, 7
      %p78 = por %p76, %p77
      %p79 = scmp.ne.s32.totalorder %s70, %s71
      %p80 = scmp.eq.s32.totalorder %s18, 0
      %p81 = por %p79, %p80
      %p82 = scmp.ne.s32.totalorder %s70, %s71
      %p83 = scmp.eq.s32.totalorder %s19, 7
      %p84 = por %p82, %p83
      %p86 = scmp.ne.s32.totalorder %s71, %s85
      %p87 = scmp.eq.s32.totalorder %s19, 0
      %p88 = por %p86, %p87
      %s90 = sadd.s32 %s89, 1
      %p93 = scmp.eq.s32.totalorder %s13, 7
      %p94 = scmp.ne.s32.totalorder %s89, %s91
      %p95 = scmp.eq.s32.totalorder %s13, 0
      %p96 = por %p94, %p95
      %p97 = scmp.ne.s32.totalorder %s89, %s91
      %p98 = scmp.eq.s32.totalorder %s18, 7
      %p99 = por %p97, %p98
      %p100 = scmp.ne.s32.totalorder %s91, %s92
      %p101 = scmp.eq.s32.totalorder %s18, 0
      %p102 = por %p100, %p101
      %p103 = scmp.ne.s32.totalorder %s91, %s92
      %p104 = scmp.eq.s32.totalorder %s19, 7
      %p105 = por %p103, %p104
      %p107 = scmp.ne.s32.totalorder %s92, %s106
      %p108 = scmp.eq.s32.totalorder %s19, 0
      %p109 = por %p107, %p108
      %s111 = sadd.s32 %s110, 1
      %p114 = scmp.eq.s32.totalorder %s13, 7
      %p115 = scmp.ne.s32.totalorder %s110, %s112
      %p116 = scmp.eq.s32.totalorder %s13, 0
      %p117 = por %p115, %p116
      %p118 = scmp.ne.s32.totalorder %s110, %s112
      %p119 = scmp.eq.s32.totalorder %s18, 7
      %p120 = por %p118, %p119
      %p121 = scmp.ne.s32.totalorder %s112, %s113
      %p122 = scmp.eq.s32.totalorder %s18, 0
      %p123 = por %p121, %p122
      %p124 = scmp.ne.s32.totalorder %s112, %s113
      %p125 = scmp.eq.s32.totalorder %s19, 7
      %p126 = por %p124, %p125
      %p128 = scmp.ne.s32.totalorder %s113, %s127
      %p129 = scmp.eq.s32.totalorder %s19, 0
      %p130 = por %p128, %p129
      %s131 = smul.u32 %s22, %s21
      %s132 = smul.u32 %s31, %s35
      %s133 = ssub.s32 %s20, %s39
      %s134 = ssub.s32 %s131, %s132
      %s135 = sor.u32 %s133, %s134
      %p136 = scmp.eq.s32.totalorder %s135, 0
      %s138 = sadd.s32 %s137, 1
      %s139 = scalar_select %p136, %s137, %s138
      %p142 = pneg %p136
      %p143 = scmp.eq.s32.totalorder %s13, 7
      %p144 = por %p142, %p143
      %p145 = scmp.ne.s32.totalorder %s137, %s140
      %p146 = scmp.eq.s32.totalorder %s13, 0
      %p147 = por %p145, %p146
      %p148 = scmp.ne.s32.totalorder %s137, %s140
      %p149 = scmp.eq.s32.totalorder %s18, 7
      %p150 = por %p148, %p149
      %p151 = scmp.ne.s32.totalorder %s140, %s141
      %p152 = scmp.eq.s32.totalorder %s18, 0
      %p153 = por %p151, %p152
      %p154 = scmp.ne.s32.totalorder %s140, %s141
      %p155 = scmp.eq.s32.totalorder %s19, 7
      %p156 = por %p154, %p155
      %p158 = scmp.ne.s32.totalorder %s141, %s157
      %p159 = scmp.eq.s32.totalorder %s19, 0
      %p160 = por %p158, %p159
      %p161 = scmp.le.s32.totalorder 1, %s13
      %p162 = scmp.lt.s32.totalorder %s13, 9
      %p163 = pnand %p161, %p162
      %p164 = pneg %p163
      // Predicated region
      $region9: #{tpu_custom_call.1} parent=5 // pred_check
        _
      $region10: #{tpu_custom_call.1} parent=5 // pred_check_branch
        %166 = sbr.rel (%p163) target = $region12
      $region11: #{tpu_custom_call.1} parent=5 // pred_region
        %s167 = ssub.s32 %s13, 1
        // Predicated region
        $region13: #{tpu_custom_call.1} parent=11 // pred_check
          %p168 = pneg %p81
        $region14: #{tpu_custom_call.1} parent=11 // pred_check_branch
          %170 = sbr.rel (%p168) target = $region16
        $region15: #{tpu_custom_call.1} parent=11 // pred_region
          _
        $region16: #{tpu_custom_call.1} parent=11 // pred_fallthru
          _
        // Predicated region
        $region17: #{tpu_custom_call.1} parent=11 // pred_check
          %p171 = pneg %p102
        $region18: #{tpu_custom_call.1} parent=11 // pred_check_branch
          %173 = sbr.rel (%p171) target = $region20
        $region19: #{tpu_custom_call.1} parent=11 // pred_region
          _
        $region20: #{tpu_custom_call.1} parent=11 // pred_fallthru
          _
        // Predicated region
        $region21: #{tpu_custom_call.1} parent=11 // pred_check
          %p174 = pneg %p123
        $region22: #{tpu_custom_call.1} parent=11 // pred_check_branch
          %176 = sbr.rel (%p174) target = $region24
        $region23: #{tpu_custom_call.1} parent=11 // pred_region
          _
        $region24: #{tpu_custom_call.1} parent=11 // pred_fallthru
          _
      $region12: #{tpu_custom_call.1} parent=5 // pred_fallthru
        _
      %p177 = scmp.lt.s32.totalorder %s13, 8
      // Predicated region
      $region25: #{tpu_custom_call.1} parent=5 // pred_check
        %p178 = pneg %p177
      $region26: #{tpu_custom_call.1} parent=5 // pred_check_branch
        %180 = sbr.rel (%p178) target = $region28
      $region27: #{tpu_custom_call.1} parent=5 // pred_region
        // Predicated region
        $region29: #{tpu_custom_call.1} parent=27 // pred_check
          %p181 = pneg %p54
        $region30: #{tpu_custom_call.1} parent=27 // pred_check_branch
          %183 = sbr.rel (%p181) target = $region32
        $region31: #{tpu_custom_call.1} parent=27 // pred_region
          %s184 = sand.u32 %s44, 1
          %s185 = sand.u32 %s44, 1
          %s186 = smul.addr %s185, 16
          %s187 = scalar_lea.vmem [#allocation4], %s186
          %s188 = smul.addr %s20, 4
          %s189 = sadd.s32 %s22, %s188
          %s190 = smul.addr %s189, 8
          %s191 = scalar_lea.vmem %s0, %s190
          // Predicated region
          $region33: #{tpu_custom_call.1} parent=31 // pred_check
            _
          $region34: #{tpu_custom_call.1} parent=31 // pred_check_branch
            %193 = sbr.rel (0) target = $region36
          $region35: #{tpu_custom_call.1} parent=31 // pred_region
            // Predicated region
            $region37: #{tpu_custom_call.1} parent=35 // pred_check
              _
            $region38: #{tpu_custom_call.1} parent=35 // pred_check_branch
              %195 = sbr.rel (0) target = $region40
            $region39: #{tpu_custom_call.1} parent=35 // pred_region
              // Predicated region
              $region52: #{tpu_custom_call.1} parent=39 // pred_check
                _
              $region53: #{tpu_custom_call.1} parent=39 // pred_check_branch
                %213 = sbr.rel (0) target = $region55
              $region54: #{tpu_custom_call.1} parent=39 // pred_region
                loop: start=0, step=1, limit=1
                $region56: #{tpu_custom_call.1} parent=54 // loop_pre_header
                  _
                $region57: #{tpu_custom_call.1} parent=54 // loop_header
                  %s215 = sphi 0, %s219
                  %p216 = scmp.ge.s32.totalorder %s215, 1
                  %s220 = sphi %s191, %s191
                  %s221 = sphi %s187, %s187
                $region58: #{tpu_custom_call.1} parent=54 // loop_header_branch
                  %218 = sbr.rel (%p216) target = $region62
                $region59: #{tpu_custom_call.1} parent=54 // loop_body
                  %v222 = vld [vmem:[%s220] sm:$0xff]
                  %223 = vst [vmem:[%s221] sm:$0xff] %v222
                  %v224 = vld [vmem:[%s220 + $0x10] sm:$0xff]
                  %225 = vst [vmem:[%s221 + $0x8] sm:$0xff] %v224
                $region60: #{tpu_custom_call.1} parent=54 // loop_footer
                  %s219 = sadd.s32 1, %s215
                $region61: #{tpu_custom_call.1} parent=54 // loop_footer_branch
                  %214 = sbr.rel target = $region57
                $region62: #{tpu_custom_call.1} parent=54 // loop_exit
                  _
              $region55: #{tpu_custom_call.1} parent=39 // pred_fallthru
                _
              // Predicated region
              $region63: #{tpu_custom_call.1} parent=39 // pred_check
                _
              $region64: #{tpu_custom_call.1} parent=39 // pred_check_branch
                %227 = sbr.rel target = $region66
              $region65: #{tpu_custom_call.1} parent=39 // pred_region
                _
              $region66: #{tpu_custom_call.1} parent=39 // pred_fallthru
                _
            $region40: #{tpu_custom_call.1} parent=35 // pred_fallthru
              _
            // Predicated region
            $region41: #{tpu_custom_call.1} parent=35 // pred_check
              _
            $region42: #{tpu_custom_call.1} parent=35 // pred_check_branch
              %197 = sbr.rel target = $region44
            $region43: #{tpu_custom_call.1} parent=35 // pred_region
              %s199 = ssub.s32 256, 1
              loop: start=0, step=1, limit=1
              $region45: #{tpu_custom_call.1} parent=43 // loop_pre_header
                _
              $region46: #{tpu_custom_call.1} parent=43 // loop_header
                %s201 = sphi 0, %s205
                %p202 = scmp.ge.s32.totalorder %s201, 1
                %s206 = sphi %s191, %s191
                %s207 = sphi %s187, %s187
              $region47: #{tpu_custom_call.1} parent=43 // loop_header_branch
                %204 = sbr.rel (%p202) target = $region51
              $region48: #{tpu_custom_call.1} parent=43 // loop_body
                %v208 = vld [vmem:[%s206] sm:%s199]
                %209 = vst [vmem:[%s207] sm:%s199] %v208
                %v210 = vld [vmem:[%s206 + $0x10] sm:%s199]
                %211 = vst [vmem:[%s207 + $0x8] sm:%s199] %v210
              $region49: #{tpu_custom_call.1} parent=43 // loop_footer
                %s205 = sadd.s32 1, %s201
              $region50: #{tpu_custom_call.1} parent=43 // loop_footer_branch
                %200 = sbr.rel target = $region46
              $region51: #{tpu_custom_call.1} parent=43 // loop_exit
                _
            $region44: #{tpu_custom_call.1} parent=35 // pred_fallthru
              _
          $region36: #{tpu_custom_call.1} parent=31 // pred_fallthru
            _
          %228 = vnop
        $region32: #{tpu_custom_call.1} parent=27 // pred_fallthru
          _
      $region28: #{tpu_custom_call.1} parent=5 // pred_fallthru
        _
      %p229 = scmp.le.s32.totalorder 1, %s13
      %p230 = scmp.lt.s32.totalorder %s13, 9
      %p231 = pnand %p229, %p230
      %p232 = pneg %p231
      // Predicated region
      $region67: #{tpu_custom_call.1} parent=5 // pred_check
        _
      $region68: #{tpu_custom_call.1} parent=5 // pred_check_branch
        %234 = sbr.rel (%p231) target = $region70
      $region69: #{tpu_custom_call.1} parent=5 // pred_region
        %s235 = ssub.s32 %s13, 1
        %s236 = sand.u32 %s47, 1
        %s237 = sand.u32 %s47, 1
        %s238 = smul.addr %s237, 16
        %s239 = scalar_lea.vmem [#allocation4], %s238
        // Predicated region
        $region71: #{tpu_custom_call.1} parent=69 // pred_check
          %p240 = pneg %p60
        $region72: #{tpu_custom_call.1} parent=69 // pred_check_branch
          %242 = sbr.rel (%p240) target = $region74
        $region73: #{tpu_custom_call.1} parent=69 // pred_region
          _
        $region74: #{tpu_custom_call.1} parent=69 // pred_fallthru
          _
        %s243 = sand.u32 %s47, 1
        %s244 = sand.u32 %s47, 1
        %s245 = smul.addr %s244, 16
        %s246 = scalar_lea.vmem [#allocation4], %s245
        %p247 = pneg %p60
        %p248 = pneg %p57
        %p249 = pneg %p81
        %p250 = pneg %p78
        %p251 = pneg %p102
        %p252 = pneg %p99
        %p253 = pneg %p123
        %p254 = pneg %p120
        %p255 = pneg %p153
        %p256 = pneg %p150
        %s257 = sand.u32 %s140, 1
        %s258 = scalar_lea.sflag [#allocation6], %s257
        %s259 = sand.u32 %s140, 1
        %s260 = smul.addr %s259, 32
        %s261 = scalar_lea.vmem [#allocation5], %s260
        %s262 = smul.u32 %s25, %s24
        %v263 = vld [vmem:[%s1] sm:$0xff]
        %v264 = vld [vmem:[%s1 + $0x8] sm:$0xff]
        %v265 = vld [vmem:[%s1 + $0x10] sm:$0xff]
        %v266 = vld [vmem:[%s1 + $0x18] sm:$0xff]
        %v267 = vld [vmem:[%s239] sm:$0xff]
        %v268 = vld [vmem:[%s239 + $0x8] sm:$0x3]
        %vm269 = vcmask 80896
        %v271 = vsel %vm269, %v263, 0
        %v274 = vsel %vm269, %v264, 0
        %v277 = vsel %vm269, %v265, 0
        %v280 = vsel %vm269, %v266, 0
        %vm282 = vcmask 1041408
        %v284 = vsel %vm282, %v268, 0
        %286 = vmatprep.subr.mxu0 0.0
        %287 = vmatpush1.msra.mxu0 0.0
        %288 = vmatprep.subr.mxu0 0.0
        %289 = vmatpush1.msra.mxu0 0.0
        %290 = vmatprep.subr.mxu0 0.0
        %291 = vmatpush1.msra.mxu0 0.0
        %292 = vmatprep.subr.mxu0 0.0
        %293 = vmatpush1.msra.mxu0 0.0
        %294 = vmatprep.subr.mxu0 0.0
        %295 = vmatpush1.msra.mxu0 0.0
        %296 = vmatprep.subr.mxu0 0.0
        %297 = vmatpush1.msra.mxu0 0.0
        %298 = vmatprep.subr.mxu0 0.0
        %299 = vmatpush1.msra.mxu0 0.0
        %300 = vmatprep.subr.mxu0 0.0
        %301 = vmatpush1.msra.mxu0 0.0
        %302 = vmatprep.subr.mxu0 0.0
        %303 = vmatpush1.msra.mxu0 0.0
        %304 = vmatprep.subr.mxu0 0.0
        %305 = vmatpush1.msra.mxu0 0.0
        %306 = vmatprep.subr.mxu0 0.0
        %307 = vmatpush1.msra.mxu0 0.0
        %308 = vmatprep.subr.mxu0 0.0
        %309 = vmatpush1.msra.mxu0 0.0
        %310 = vmatprep.subr.mxu0 0.0
        %311 = vmatpush1.msra.mxu0 0.0
        %312 = vmatprep.subr.mxu0 0.0
        %313 = vmatpush1.msra.mxu0 0.0
        %314 = vmatprep.subr.mxu0 0.0
        %315 = vmatpush1.msra.mxu0 %v284
        %316 = vmatprep.subr.mxu0 0.0
        %317 = vmatpush1.msra.mxu0 %v267
        %318 = vmatprep.subr.mxu0 0.0
        %319 = vmatpush2.msra.mxu0 0.0
        %320 = vmatprep.subr.mxu0 0.0
        %321 = vmatpush2.msra.mxu0 0.0
        %322 = vmatprep.subr.mxu0 0.0
        %323 = vmatpush2.msra.mxu0 0.0
        %324 = vmatprep.subr.mxu0 0.0
        %325 = vmatpush2.msra.mxu0 0.0
        %326 = vmatprep.subr.mxu0 0.0
        %327 = vmatpush2.msra.mxu0 0.0
        %328 = vmatprep.subr.mxu0 0.0
        %329 = vmatpush2.msra.mxu0 0.0
        %330 = vmatprep.subr.mxu0 0.0
        %331 = vmatpush2.msra.mxu0 0.0
        %332 = vmatprep.subr.mxu0 0.0
        %333 = vmatpush2.msra.mxu0 0.0
        %334 = vmatprep.subr.mxu0 0.0
        %335 = vmatpush2.msra.mxu0 0.0
        %336 = vmatprep.subr.mxu0 0.0
        %337 = vmatpush2.msra.mxu0 0.0
        %338 = vmatprep.subr.mxu0 0.0
        %339 = vmatpush2.msra.mxu0 0.0
        %340 = vmatprep.subr.mxu0 0.0
        %341 = vmatpush2.msra.mxu0 0.0
        %342 = vmatprep.subr.mxu0 0.0
        %343 = vmatpush2.msra.mxu0 0.0
        %344 = vmatprep.subr.mxu0 0.0
        %345 = vmatpush2.msra.mxu0 0.0
        %346 = vmatprep.subr.mxu0 0.0
        %347 = vmatpush2.msra.mxu0 0.0
        %348 = vmatprep.subr.mxu0 0.0
        %349 = vmatpush2.msra.mxu0 0.0
        %350 = vmatprep.mubr.f32.mxu0 0.0
        %351 = vmatmul.mubr.f32.gmra.mxu0 %v271
        %v352 = vpop.f32.mrf.mxu0
        %v353 = vadd.f32 0.0, %v352
        %v354 = vpop.f32.mrf.mxu0
        %355 = vmatprep.mubr.f32.mxu0 0.0
        %356 = vmatmul.mubr.f32.gmra.mxu0 %v274
        %v357 = vpop.f32.mrf.mxu0
        %v358 = vadd.f32 0.0, %v357
        %v359 = vpop.f32.mrf.mxu0
        %360 = vmatprep.mubr.f32.mxu0 0.0
        %361 = vmatmul.mubr.f32.gmra.mxu0 %v277
        %v362 = vpop.f32.mrf.mxu0
        %v363 = vadd.f32 0.0, %v362
        %v364 = vpop.f32.mrf.mxu0
        %365 = vmatprep.mubr.f32.mxu0 0.0
        %366 = vmatmul.mubr.f32.gmra.mxu0 %v280
        %v367 = vpop.f32.mrf.mxu0
        %v368 = vadd.f32 0.0, %v367
        %v369 = vpop.f32.mrf.mxu0
        %370 = vdwg.mxu0
        %p371 = scmp.eq.s32.totalorder %s24, 0
        %p372 = scmp.eq.s32.totalorder %s25, 0
        %p373 = pnand %p371, %p372
        %p374 = pneg %p373
        // Predicated region
        $region75: #{tpu_custom_call.1} parent=69 // pred_check
          _
        $region76: #{tpu_custom_call.1} parent=69 // pred_check_branch
          %376 = sbr.rel (%p373) target = $region78
        $region77: #{tpu_custom_call.1} parent=69 // pred_region
          %vm377 = vcmask 7168
          %378 = vst.msk [vmem:[#allocation2] sm:$0xff] %vm377, 0.0
          %379 = vst.msk [vmem:[#allocation2 + $0x8] sm:$0xff] %vm377, 0.0
          %380 = vst.msk [vmem:[#allocation2 + $0x10] sm:$0xff] %vm377, 0.0
          %381 = vst.msk [vmem:[#allocation2 + $0x18] sm:$0xff] %vm377, 0.0
          %382 = vst.msk [vmem:[#allocation3] sm:$0xff] %vm377, 0.0
          %383 = vst.msk [vmem:[#allocation3 + $0x8] sm:$0xff] %vm377, 0.0
          %384 = vst.msk [vmem:[#allocation3 + $0x10] sm:$0xff] %vm377, 0.0
          %385 = vst.msk [vmem:[#allocation3 + $0x18] sm:$0xff] %vm377, 0.0
        $region78: #{tpu_custom_call.1} parent=69 // pred_fallthru
          _
        // Predicated region
        $region79: #{tpu_custom_call.1} parent=69 // pred_check
          %p386 = pneg %p371
        $region80: #{tpu_custom_call.1} parent=69 // pred_check_branch
          %388 = sbr.rel (%p386) target = $region82
        $region81: #{tpu_custom_call.1} parent=69 // pred_region
          %389 = vadd.xlane.f32.xlu0 %v353
          %v390 = vpop.xlane.xlu0 %389
          %391 = vadd.xlane.f32.xlu0 %v358
          %v392 = vpop.xlane.xlu0 %391
          %393 = vadd.xlane.f32.xlu0 %v363
          %v394 = vpop.xlane.xlu0 %393
          %395 = vadd.xlane.f32.xlu0 %v368
          %v396 = vpop.xlane.xlu0 %395
          %v397 = vmul.f32 %v390, 0.0078125
          %v398 = vmul.f32 %v392, 0.0078125
          %v399 = vmul.f32 %v394, 0.0078125
          %v400 = vmul.f32 %v396, 0.0078125
          %v401 = vsub.f32 %v353, %v397
          %v402 = vsub.f32 %v358, %v398
          %v403 = vsub.f32 %v363, %v399
          %v404 = vsub.f32 %v368, %v400
          %v405 = vmul.f32 %v401, %v401
          %v406 = vmul.f32 %v402, %v402
          %v407 = vmul.f32 %v403, %v403
          %v408 = vmul.f32 %v404, %v404
          %409 = vadd.xlane.f32.xlu0 %v405
          %v410 = vpop.xlane.xlu0 %409
          %411 = vadd.xlane.f32.xlu0 %v406
          %v412 = vpop.xlane.xlu0 %411
          %413 = vadd.xlane.f32.xlu0 %v407
          %v414 = vpop.xlane.xlu0 %413
          %415 = vadd.xlane.f32.xlu0 %v408
          %v416 = vpop.xlane.xlu0 %415
          %s417 = smul.u32 %s25, 128
          %s418 = scvt.s32.f32 %s417
          %s419 = sadd.f32 %s418, 128.0
          %v420 = vld [vmem:[#allocation2] sm:$0xff]
          %v421 = vld [vmem:[#allocation2 + $0x8] sm:$0xff]
          %v422 = vld [vmem:[#allocation2 + $0x10] sm:$0xff]
          %v423 = vld [vmem:[#allocation2 + $0x18] sm:$0xff]
          %v424 = vsub.f32 %v397, %v420
          %v425 = vsub.f32 %v398, %v421
          %v426 = vsub.f32 %v399, %v422
          %v427 = vsub.f32 %v400, %v423
          %v428 = vstv %s419
          %v429 = vrcp.pop %v428
          %s430 = vtos %v429
          %s431 = smul.f32 128.0, %s430
          %v432 = vstv %s431
          %v433 = vmul.f32 %v424, %v432
          %v434 = vmul.f32 %v425, %v432
          %v435 = vmul.f32 %v426, %v432
          %v436 = vmul.f32 %v427, %v432
          %v437 = vadd.f32 %v420, %v433
          %v438 = vadd.f32 %v421, %v434
          %v439 = vadd.f32 %v422, %v435
          %v440 = vadd.f32 %v423, %v436
          %vm441 = vcmask 7168
          %442 = vst.msk [vmem:[#allocation2] sm:$0xff] %vm441, %v437
          %443 = vst.msk [vmem:[#allocation2 + $0x8] sm:$0xff] %vm441, %v438
          %444 = vst.msk [vmem:[#allocation2 + $0x10] sm:$0xff] %vm441, %v439
          %445 = vst.msk [vmem:[#allocation2 + $0x18] sm:$0xff] %vm441, %v440
          %v446 = vld [vmem:[#allocation3] sm:$0xff]
          %v447 = vld [vmem:[#allocation3 + $0x8] sm:$0xff]
          %v448 = vld [vmem:[#allocation3 + $0x10] sm:$0xff]
          %v449 = vld [vmem:[#allocation3 + $0x18] sm:$0xff]
          %v450 = vadd.f32 %v446, %v410
          %v451 = vadd.f32 %v447, %v412
          %v452 = vadd.f32 %v448, %v414
          %v453 = vadd.f32 %v449, %v416
          %v454 = vmul.f32 %v424, %v424
          %v455 = vmul.f32 %v425, %v425
          %v456 = vmul.f32 %v426, %v426
          %v457 = vmul.f32 %v427, %v427
          %s458 = smul.f32 %s418, 128.0
          %v459 = vstv %s419
          %v460 = vrcp.pop %v459
          %s461 = vtos %v460
          %s462 = smul.f32 %s458, %s461
          %v463 = vstv %s462
          %v464 = vmul.f32 %v454, %v463
          %v465 = vmul.f32 %v455, %v463
          %v466 = vmul.f32 %v456, %v463
          %v467 = vmul.f32 %v457, %v463
          %v468 = vadd.f32 %v450, %v464
          %v469 = vadd.f32 %v451, %v465
          %v470 = vadd.f32 %v452, %v466
          %v471 = vadd.f32 %v453, %v467
          %472 = vst.msk [vmem:[#allocation3] sm:$0xff] %vm441, %v468
          %473 = vst.msk [vmem:[#allocation3 + $0x8] sm:$0xff] %vm441, %v469
          %474 = vst.msk [vmem:[#allocation3 + $0x10] sm:$0xff] %vm441, %v470
          %475 = vst.msk [vmem:[#allocation3 + $0x18] sm:$0xff] %vm441, %v471
        $region82: #{tpu_custom_call.1} parent=69 // pred_fallthru
          _
        %p476 = scmp.eq.s32.totalorder %s24, 1
        // Predicated region
        $region83: #{tpu_custom_call.1} parent=69 // pred_check
          %p477 = pneg %p476
        $region84: #{tpu_custom_call.1} parent=69 // pred_check_branch
          %479 = sbr.rel (%p477) target = $region86
        $region85: #{tpu_custom_call.1} parent=69 // pred_region
          %v480 = vld [vmem:[#allocation3] sm:$0xff]
          %v481 = vld [vmem:[#allocation3 + $0x8] sm:$0xff]
          %v482 = vld [vmem:[#allocation3 + $0x10] sm:$0xff]
          %v483 = vld [vmem:[#allocation3 + $0x18] sm:$0xff]
          %v484 = vmul.f32 %v480, 0.00390625
          %v485 = vmul.f32 %v481, 0.00390625
          %v486 = vmul.f32 %v482, 0.00390625
          %v487 = vmul.f32 %v483, 0.00390625
          %v488 = vld [vmem:[#allocation2] sm:$0xff]
          %v489 = vld [vmem:[#allocation2 + $0x8] sm:$0xff]
          %v490 = vld [vmem:[#allocation2 + $0x10] sm:$0xff]
          %v491 = vld [vmem:[#allocation2 + $0x18] sm:$0xff]
          %493 = vset.pattern.permute.xlu0 0
          %494 = vperm.xlu0 %493, %v488
          %v495 = vpop.permute.xlu0 %494
          %498 = vset.pattern.permute.xlu0 0
          %499 = vperm.xlu0 %498, %v489
          %v500 = vpop.permute.xlu0 %499
          %503 = vset.pattern.permute.xlu0 0
          %504 = vperm.xlu0 %503, %v490
          %v505 = vpop.permute.xlu0 %504
          %508 = vset.pattern.permute.xlu0 0
          %509 = vperm.xlu0 %508, %v491
          %v510 = vpop.permute.xlu0 %509
          %v512 = vsub.f32 %v353, %v495
          %v513 = vsub.f32 %v358, %v500
          %v514 = vsub.f32 %v363, %v505
          %v515 = vsub.f32 %v368, %v510
          %v516 = vadd.f32 %v484, 1e-05
          %v517 = vadd.f32 %v485, 1e-05
          %v518 = vadd.f32 %v486, 1e-05
          %v519 = vadd.f32 %v487, 1e-05
          %v520 = vrsqrt.pop %v516
          %v521 = vrsqrt.pop %v517
          %v522 = vrsqrt.pop %v518
          %v523 = vrsqrt.pop %v519
          %525 = vset.pattern.permute.xlu0 0
          %526 = vperm.xlu0 %525, %v520
          %v527 = vpop.permute.xlu0 %526
          %530 = vset.pattern.permute.xlu0 0
          %531 = vperm.xlu0 %530, %v521
          %v532 = vpop.permute.xlu0 %531
          %535 = vset.pattern.permute.xlu0 0
          %536 = vperm.xlu0 %535, %v522
          %v537 = vpop.permute.xlu0 %536
          %540 = vset.pattern.permute.xlu0 0
          %541 = vperm.xlu0 %540, %v523
          %v542 = vpop.permute.xlu0 %541
          %v544 = vmul.f32 %v512, %v527
          %v545 = vmul.f32 %v513, %v532
          %v546 = vmul.f32 %v514, %v537
          %v547 = vmul.f32 %v515, %v542
          %v548 = vld [vmem:[%s2] sm:$0xff]
          %v549 = vld [vmem:[%s2 + $0x8] sm:$0xff]
          %v550 = vld [vmem:[%s2 + $0x10] sm:$0xff]
          %v551 = vld [vmem:[%s2 + $0x18] sm:$0xff]
          %553 = vset.pattern.permute.xlu0 0
          %554 = vperm.xlu0 %553, %v548
          %v555 = vpop.permute.xlu0 %554
          %558 = vset.pattern.permute.xlu0 0
          %559 = vperm.xlu0 %558, %v549
          %v560 = vpop.permute.xlu0 %559
          %563 = vset.pattern.permute.xlu0 0
          %564 = vperm.xlu0 %563, %v550
          %v565 = vpop.permute.xlu0 %564
          %568 = vset.pattern.permute.xlu0 0
          %569 = vperm.xlu0 %568, %v551
          %v570 = vpop.permute.xlu0 %569
          %v572 = vmul.f32 %v544, %v555
          %v573 = vmul.f32 %v545, %v560
          %v574 = vmul.f32 %v546, %v565
          %v575 = vmul.f32 %v547, %v570
          %v576 = vld [vmem:[%s3] sm:$0xff]
          %v577 = vld [vmem:[%s3 + $0x8] sm:$0xff]
          %v578 = vld [vmem:[%s3 + $0x10] sm:$0xff]
          %v579 = vld [vmem:[%s3 + $0x18] sm:$0xff]
          %581 = vset.pattern.permute.xlu0 0
          %582 = vperm.xlu0 %581, %v576
          %v583 = vpop.permute.xlu0 %582
          %586 = vset.pattern.permute.xlu0 0
          %587 = vperm.xlu0 %586, %v577
          %v588 = vpop.permute.xlu0 %587
          %591 = vset.pattern.permute.xlu0 0
          %592 = vperm.xlu0 %591, %v578
          %v593 = vpop.permute.xlu0 %592
          %596 = vset.pattern.permute.xlu0 0
          %597 = vperm.xlu0 %596, %v579
          %v598 = vpop.permute.xlu0 %597
          %v600 = vadd.f32 %v572, %v583
          %v601 = vadd.f32 %v573, %v588
          %v602 = vadd.f32 %v574, %v593
          %v603 = vadd.f32 %v575, %v598
          %v604 = vmul.f32 %v600, 0.5
          %v605 = vmul.f32 %v601, 0.5
          %v606 = vmul.f32 %v602, 0.5
          %v607 = vmul.f32 %v603, 0.5
          %v608 = vmul.f32 %v600, 0.70710677
          %v609 = vmul.f32 %v601, 0.70710677
          %v610 = vmul.f32 %v602, 0.70710677
          %v611 = vmul.f32 %v603, 0.70710677
          %v612 = verf.f32.pop %v608
          %v613 = verf.f32.pop %v609
          %v614 = verf.f32.pop %v610
          %v615 = verf.f32.pop %v611
          %v616 = vadd.f32 %v612, 1.0
          %v617 = vadd.f32 %v613, 1.0
          %v618 = vadd.f32 %v614, 1.0
          %v619 = vadd.f32 %v615, 1.0
          %v620 = vmul.f32 %v604, %v616
          %v621 = vmul.f32 %v605, %v617
          %v622 = vmul.f32 %v606, %v618
          %v623 = vmul.f32 %v607, %v619
          %624 = vst [vmem:[%s261] sm:$0xff] %v620
          %625 = vst [vmem:[%s261 + $0x8] sm:$0xff] %v621
          %626 = vst [vmem:[%s261 + $0x10] sm:$0xff] %v622
          %627 = vst [vmem:[%s261 + $0x18] sm:$0xff] %v623
        $region86: #{tpu_custom_call.1} parent=69 // pred_fallthru
          _
        %s628 = sand.u32 %s140, 1
        %s629 = scalar_lea.sflag [#allocation6], %s628
        %s630 = sand.u32 %s140, 1
        %s631 = smul.addr %s630, 32
        %s632 = scalar_lea.vmem [#allocation5], %s631
        // Predicated region
        $region87: #{tpu_custom_call.1} parent=69 // pred_check
          %p633 = pneg %p150
        $region88: #{tpu_custom_call.1} parent=69 // pred_check_branch
          %635 = sbr.rel (%p633) target = $region90
        $region89: #{tpu_custom_call.1} parent=69 // pred_region
          %s636 = smul.u32 %s25, %s24
          %s638 = ssub.s32 512, 512
          %639 = vsyncadd %s629, %s638
          %s640 = smul.addr %s23, 8
          %s641 = sadd.s32 %s636, %s640
          %s642 = smul.addr %s641, 128
          %s643 = scalar_lea.hbm %s4, %s642
          %s644 = sshll.u32 %s632, 4
          %s645 = int_to_ptr.vmem [resolvable:$true] %s644
          %650 = dma.vmem_to_hbm [thread:$0]  %s645, 512, %s643, %s629, 128, 256, 8
        $region90: #{tpu_custom_call.1} parent=69 // pred_fallthru
          _
      $region70: #{tpu_custom_call.1} parent=5 // pred_fallthru
        _
      %p651 = scmp.le.s32.totalorder 2, %s13
      // Predicated region
      $region91: #{tpu_custom_call.1} parent=5 // pred_check
        %p652 = pneg %p651
      $region92: #{tpu_custom_call.1} parent=5 // pred_check_branch
        %654 = sbr.rel (%p652) target = $region94
      $region93: #{tpu_custom_call.1} parent=5 // pred_region
        %s655 = ssub.s32 %s13, 2
        // Predicated region
        $region95: #{tpu_custom_call.1} parent=93 // pred_check
          %p656 = pneg %p156
        $region96: #{tpu_custom_call.1} parent=93 // pred_check_branch
          %658 = sbr.rel (%p656) target = $region98
        $region97: #{tpu_custom_call.1} parent=93 // pred_region
          %s659 = sand.u32 %s141, 1
          %s660 = scalar_lea.sflag [#allocation6], %s659
          %s661 = sand.u32 %s141, 1
          %s662 = smul.addr %s661, 32
          %s663 = scalar_lea.vmem [#allocation5], %s662
          %664 = dma.done %s660, 512
        $region98: #{tpu_custom_call.1} parent=93 // pred_fallthru
          _
      $region94: #{tpu_custom_call.1} parent=5 // pred_fallthru
        _
    $region6: #{tpu_custom_call.1} parent=1 // loop_footer
      %s17 = sadd.s32 1, %s13
    $region7: #{tpu_custom_call.1} parent=1 // loop_footer_branch
      %12 = sbr.rel target = $region3
    $region8: #{tpu_custom_call.1} parent=1 // loop_exit
      _
    %665 = vsyncpa [#allocation6], 1
    %s666 = scalar_lea.sflag [#allocation6], 1
    %667 = vsyncpa %s666, 1

</llo_original>
